<compile_context>
chip_gen: v5e
topology: v5e:2x2
jax: 0.10.0
libtpu: 0.0.40
codegen_flags: <defaults>
</compile_context>

<pallas_src>
import jax
import jax.numpy as jnp
from jax.experimental import pallas as pl
from jax.experimental.pallas import tpu as pltpu

DIM_DESC = 256


def _round_up(x, m):
    return ((x + m - 1) // m) * m


def embed_l2norm_kernel(x_ref, w_ref, o_ref, acc_ref):
    """Fused embedding projection (MXU, f32 accumulation) + row-wise L2 norm.

    x_ref:   (TILE_N, TILE_K) bf16 flattened-patch tile (VMEM)
    w_ref:   (TILE_K, D)      bf16 projection-weight tile (VMEM, resident if K-grid==1)
    o_ref:   (TILE_N, D)      f32 L2-normalized descriptor tile (VMEM)
    acc_ref: (TILE_N, D)      f32 accumulator scratch (VMEM)
    """
    k = pl.program_id(1)

    @pl.when(k == 0)
    def _():
        acc_ref[...] = jnp.zeros_like(acc_ref)

    acc_ref[...] += jnp.dot(
        x_ref[...], w_ref[...], preferred_element_type=jnp.float32
    )

    @pl.when(k == pl.num_programs(1) - 1)
    def _():
        y = acc_ref[...]
        # l2_norm: y / ||y||_2 along last axis.  rsqrt * y keeps the work on the EUP
        # instead of a sqrt+divide VALU chain.  No epsilon, matching torch exactly.
        sumsq = jnp.sum(y * y, axis=-1, keepdims=True)
        o_ref[...] = (y * jax.lax.rsqrt(sumsq)).astype(o_ref.dtype)


def embedding_net_forward(patch, w, *, tile_n=256, tile_k=2048):
    """EmbeddingNet.forward: descr = l2_norm(embede(patch).view(-1, dim_desc))."""
    n = patch.shape[0]
    f_dim = int(patch.shape[1] * patch.shape[2] * patch.shape[3])
    d = int(w.shape[1])
    assert d % 128 == 0, "dim_desc must be a multiple of 128 for lane-dense stores"

    # Flatten NCHW patch row-major; cast operands to bf16 (f32 accumulation in-kernel).
    x = patch.reshape(n, f_dim).astype(jnp.bfloat16)
    w = w.astype(jnp.bfloat16)

    # Tile sizes: respect the (8,128) constraint and clamp to (padded) problem size.
    # tile_k == padded F keeps the whole weight resident in VMEM when F is small.
    tile_n = min(tile_n, _round_up(n, 8))
    tile_k = min(tile_k, _round_up(f_dim, 128))

    n_pad = _round_up(n, tile_n)
    f_pad = _round_up(f_dim, tile_k)
    if n_pad != n or f_pad != f_dim:
        x = jnp.pad(x, ((0, n_pad - n), (0, f_pad - f_dim)))
    if f_pad != f_dim:
        w = jnp.pad(w, ((0, f_pad - f_dim), (0, 0)))

    grid = (n_pad // tile_n, f_pad // tile_k)

    cost = pl.CostEstimate(
        flops=2 * n_pad * f_pad * d,
        transcendentals=n_pad,  # one rsqrt per row
        bytes_accessed=2 * n_pad * f_pad + 2 * f_pad * d + 4 * n_pad * d,
    )

    out = pl.pallas_call(
        embed_l2norm_kernel,
        out_shape=jax.ShapeDtypeStruct((n_pad, d), jnp.float32),
        grid_spec=pltpu.PrefetchScalarGridSpec(
            num_scalar_prefetch=0,
            grid=grid,
            in_specs=[
                pl.BlockSpec((tile_n, tile_k), lambda i, k: (i, k)),
                pl.BlockSpec((tile_k, d), lambda i, k: (k, 0)),
            ],
            out_specs=pl.BlockSpec((tile_n, d), lambda i, k: (i, 0)),
            scratch_shapes=[pltpu.VMEM((tile_n, d), jnp.float32)],
        ),
        compiler_params=pltpu.CompilerParams(
            dimension_semantics=("parallel", "arbitrary"),
            vmem_limit_bytes=48 * 1024 * 1024,  # headroom on v7x's 64 MiB VMEM
        ),
        cost_estimate=cost,
    )(x, w)

    # Drop padded (NaN) rows introduced by batch padding.
    return out[:n]


def _reference(patch, w):
    n = patch.shape[0]
    x = patch.reshape(n, -1).astype(jnp.float32)
    y = x @ w.astype(jnp.float32)
    norm = jnp.linalg.norm(y, ord=2, axis=-1, keepdims=True)
    return y / norm


if __name__ == "__main__":
    key = jax.random.PRNGKey(0)
    k_patch, k_w = jax.random.split(key)

    # Small shapes consistent with the forward: patch is NCHW.
    N, C, H, W = 2, 4, 16, 16
    patch = jax.random.normal(k_patch, (N, C, H, W), dtype=jnp.float32)

    # Deterministic parameter init for the stand-in embedding projection.
    feat = C * H * W
    w = (jax.random.normal(k_w, (feat, DIM_DESC), dtype=jnp.float32)
         * (1.0 / jnp.sqrt(jnp.float32(feat))))

    descr = embedding_net_forward(patch, w)
    descr = jax.block_until_ready(descr)

    ref = _reference(patch, w)
    assert descr.shape == (N, DIM_DESC)
    # bf16 operands (f32 accumulation) vs the f32 reference -> looser tolerance.
    assert jnp.allclose(descr, ref, atol=2e-2, rtol=2e-2)
    # Each descriptor row must be unit-norm (epilogue runs in f32).
    assert jnp.allclose(jnp.linalg.norm(descr, axis=-1), 1.0, atol=1e-3)

    print("KERNEL_OK")
</pallas_src>

<mosaic_0001>
module attributes {stable_mosaic.version = 11 : i64} {
  func.func @embed_l2norm_kernel(%arg0: i32, %arg1: i32, %arg2: memref<8x1024xbf16, #tpu.memory_space<vmem>>, %arg3: memref<1024x256xbf16, #tpu.memory_space<vmem>>, %arg4: memref<8x256xf32, #tpu.memory_space<vmem>>, %arg5: memref<8x256xf32, #tpu.memory_space<vmem>>) attributes {dimension_semantics = [#tpu.dimension_semantics<parallel>, #tpu.dimension_semantics<arbitrary>], iteration_bounds = array<i64: 1, 1>, scalar_prefetch = 0 : i64, scratch_operands = 1 : i64, tpu.core_type = #tpu.core_type<tc>, window_params = [{transform_indices = @transform_0, window_bounds = array<i64: 8, 1024>}, {transform_indices = @transform_1, window_bounds = array<i64: 1024, 256>}, {transform_indices = @transform_2, window_bounds = array<i64: 8, 256>}]} {
    %c0_i32 = arith.constant 0 : i32
    %0 = arith.cmpi eq, %arg1, %c0_i32 : i32
    %1 = arith.extui %0 : i1 to i32
    %c0_i32_0 = arith.constant 0 : i32
    %2 = arith.cmpi ne, %1, %c0_i32_0 : i32
    scf.if %2 {
      %cst_10 = arith.constant 0.000000e+00 : f32
      %12 = vector.broadcast %cst_10 : f32 to vector<8x256xf32>
      %c0_11 = arith.constant 0 : index
      %c0_12 = arith.constant 0 : index
      %13 = vector.load %arg5[%c0_11, %c0_12] : memref<8x256xf32, #tpu.memory_space<vmem>>, vector<8x256xf32>
      tpu.vector_store %arg5[%c0_11, %c0_12], %12 {strides = array<i32>} : memref<8x256xf32, #tpu.memory_space<vmem>>, vector<8x256xf32>,
    } else {
    }
    %c0 = arith.constant 0 : index
    %c0_1 = arith.constant 0 : index
    %3 = vector.load %arg5[%c0, %c0_1] : memref<8x256xf32, #tpu.memory_space<vmem>>, vector<8x256xf32>
    %c0_2 = arith.constant 0 : index
    %c0_3 = arith.constant 0 : index
    %4 = vector.load %arg2[%c0_2, %c0_3] : memref<8x1024xbf16, #tpu.memory_space<vmem>>, vector<8x1024xbf16>
    %c0_4 = arith.constant 0 : index
    %c0_5 = arith.constant 0 : index
    %5 = vector.load %arg3[%c0_4, %c0_5] : memref<1024x256xbf16, #tpu.memory_space<vmem>>, vector<1024x256xbf16>
    %cst = arith.constant dense<0.000000e+00> : vector<8x256xf32>
    %6 = tpu.matmul %4, %5, %cst {dimension_numbers = #tpu.dot_dimension_numbers<[1], [0], [0], [1], [0, 0, 1, 1], [], []>} : vector<8x1024xbf16>, vector<1024x256xbf16>, vector<8x256xf32> -> vector<8x256xf32>
    %7 = arith.addf %3, %6 : vector<8x256xf32>
    %c0_6 = arith.constant 0 : index
    %c0_7 = arith.constant 0 : index
    %8 = vector.load %arg5[%c0_6, %c0_7] : memref<8x256xf32, #tpu.memory_space<vmem>>, vector<8x256xf32>
    tpu.vector_store %arg5[%c0_6, %c0_7], %7 {strides = array<i32>} : memref<8x256xf32, #tpu.memory_space<vmem>>, vector<8x256xf32>,
    %c0_i32_8 = arith.constant 0 : i32
    %9 = arith.cmpi eq, %arg1, %c0_i32_8 : i32
    %10 = arith.extui %9 : i1 to i32
    %c0_i32_9 = arith.constant 0 : i32
    %11 = arith.cmpi ne, %10, %c0_i32_9 : i32
    scf.if %11 {
      %c0_10 = arith.constant 0 : index
      %c0_11 = arith.constant 0 : index
      %12 = vector.load %arg5[%c0_10, %c0_11] : memref<8x256xf32, #tpu.memory_space<vmem>>, vector<8x256xf32>
      %13 = arith.mulf %12, %12 : vector<8x256xf32>
      %cst_12 = arith.constant dense<0.000000e+00> : vector<8xf32>
      %14 = vector.multi_reduction <add>, %13, %cst_12 [1] : vector<8x256xf32> to vector<8xf32>
      %15 = vector.shape_cast %14 : vector<8xf32> to vector<8x1xf32>
      %16 = math.rsqrt %15 : vector<8x1xf32>
      %17 = vector.broadcast %16 : vector<8x1xf32> to vector<8x256xf32>
      %18 = arith.mulf %12, %17 : vector<8x256xf32>
      %c0_13 = arith.constant 0 : index
      %c0_14 = arith.constant 0 : index
      %19 = vector.load %arg4[%c0_13, %c0_14] : memref<8x256xf32, #tpu.memory_space<vmem>>, vector<8x256xf32>
      tpu.vector_store %arg4[%c0_13, %c0_14], %18 {strides = array<i32>} : memref<8x256xf32, #tpu.memory_space<vmem>>, vector<8x256xf32>,
    } else {
    }
    return
  }
  func.func @transform_0(%arg0: i32, %arg1: i32) -> (i32, i32) {
    %c0_i32 = arith.constant 0 : i32
    return %arg0, %arg1 : i32, i32
  }
  func.func @transform_1(%arg0: i32, %arg1: i32) -> (i32, i32) {
    %c0_i32 = arith.constant 0 : i32
    %c0_i32_0 = arith.constant 0 : i32
    return %arg1, %c0_i32 : i32, i32
  }
  func.func @transform_2(%arg0: i32, %arg1: i32) -> (i32, i32) {
    %c0_i32 = arith.constant 0 : i32
    %c0_i32_0 = arith.constant 0 : i32
    return %arg0, %c0_i32 : i32, i32
  }
}

</mosaic_0001>

<llo_original>
// kernel: tpu_custom_call.1
$region0: #{tpu_custom_call.1}
  #allocation0 [shape = 'u32[]', space=smem, size = 0x4, offset = 0x4, fixed_abs, tag = 'smem constant byte address 0x4 - core index']
  #allocation1 [shape = 'u32[72,128]{1,0:T(1,128)}', space=vmem, size = 0x9000, scoped, tag = 'internal scratch']
  #allocation2 [shape = 'f32[8,256]{1,0:T(8,128)}', space=vmem, size = 0x2000, scoped, tag = 'scratch operand']
  %s0 = inlined_call_operand.hbm [shape: bf16[8,1024], index: 0, kind: input, shape index: {}]
  %s1 = inlined_call_operand.hbm [shape: bf16[1024,256], index: 1, kind: input, shape index: {}]
  %s2 = inlined_call_operand.hbm [shape: f32[8,256], index: 2, kind: output, shape index: {}]
  %s3 = sld [smem:[#allocation0]]
  $region34: #{tpu_custom_call.1} parent=0
    _
  %s5 = ssub.s32 1, %s3
  %s6 = scalar_select 0, %s5, %s3
  $region1: #{tpu_custom_call.1} parent=0
    #allocation3 [shape = 'u8[16384]{0}', space=vmem, size = 0x4000, scoped, tag = 'input window, operand 0, single buffered']
    #allocation4 [shape = 's32[1]{0}', space=sflag, size = 0x4, scoped, tag = 'scoped memory for tpu_custom_call.1']
    #allocation5 [shape = 's32[1]{0}', space=sflag, size = 0x4, scoped, tag = 'scoped memory for tpu_custom_call.1']
    #allocation6 [shape = 'u8[524288]{0}', space=vmem, size = 0x80000, scoped, tag = 'input window, operand 1, single buffered']
    #allocation7 [shape = 's32[1]{0}', space=sflag, size = 0x4, scoped, tag = 'scoped memory for tpu_custom_call.1']
    #allocation8 [shape = 'u8[8192]{0}', space=vmem, size = 0x2000, scoped, tag = 'output window, operand 0, single buffered']
    %7 = vsyncpa [#allocation4], 0
    %8 = vsyncpa [#allocation7], 0
    %9 = vsyncpa [#allocation5], 0
    // Predicated region
    $region2: #{tpu_custom_call.1} parent=1 // pred_check
      _
    $region3: #{tpu_custom_call.1} parent=1 // pred_check_branch
      %11 = sbr.rel (0) target = $region5
    $region4: #{tpu_custom_call.1} parent=1 // pred_region
      %13 = vsyncadd [#allocation4], 0
      %s15 = sshll.u32 %s0, 4
      %s16 = int_to_ptr.hbm [resolvable:$true] %s15
      %s17 = sshll.u32 [#allocation3], 4
      %s18 = int_to_ptr.vmem [resolvable:$true] %s17
      %20 = dma.hbm_to_vmem [thread:$0]  %s16, 512, %s18, [#allocation4]
    $region5: #{tpu_custom_call.1} parent=1 // pred_fallthru
      _
    // Predicated region
    $region6: #{tpu_custom_call.1} parent=1 // pred_check
      _
    $region7: #{tpu_custom_call.1} parent=1 // pred_check_branch
      %22 = sbr.rel (0) target = $region9
    $region8: #{tpu_custom_call.1} parent=1 // pred_region
      %24 = vsyncadd [#allocation7], 0
      %s25 = sshll.u32 %s1, 4
      %s26 = int_to_ptr.hbm [resolvable:$true] %s25
      %s27 = sshll.u32 [#allocation6], 4
      %s28 = int_to_ptr.vmem [resolvable:$true] %s27
      %33 = dma.hbm_to_vmem [thread:$0]  %s26, 16384, %s28, [#allocation7], 128, 128, 8
    $region9: #{tpu_custom_call.1} parent=1 // pred_fallthru
      _
    // Predicated region
    $region10: #{tpu_custom_call.1} parent=1 // pred_check
      _
    $region11: #{tpu_custom_call.1} parent=1 // pred_check_branch
      %35 = sbr.rel (0) target = $region13
    $region12: #{tpu_custom_call.1} parent=1 // pred_region
      %37 = dma.done [#allocation4], 512
    $region13: #{tpu_custom_call.1} parent=1 // pred_fallthru
      _
    // Predicated region
    $region14: #{tpu_custom_call.1} parent=1 // pred_check
      _
    $region15: #{tpu_custom_call.1} parent=1 // pred_check_branch
      %39 = sbr.rel (0) target = $region17
    $region16: #{tpu_custom_call.1} parent=1 // pred_region
      %41 = dma.done [#allocation7], 16384
    $region17: #{tpu_custom_call.1} parent=1 // pred_fallthru
      _
    %p42 = scmp.eq.s32.totalorder 0, 0
    // Predicated region
    $region18: #{tpu_custom_call.1} parent=1 // pred_check
      %p43 = pneg %p42
    $region19: #{tpu_custom_call.1} parent=1 // pred_check_branch
      %45 = sbr.rel (%p43) target = $region21
    $region20: #{tpu_custom_call.1} parent=1 // pred_region
      %46 = vst [vmem:[#allocation2] sm:$0xff] 0.0
      %47 = vst [vmem:[#allocation2 + $0x8] sm:$0xff] 0.0
    $region21: #{tpu_custom_call.1} parent=1 // pred_fallthru
      _
    %v48 = vld [vmem:[#allocation2] sm:$0xff]
    %v49 = vld [vmem:[#allocation2 + $0x8] sm:$0xff]
    %v50 = vld [vmem:[#allocation3] sm:$0xff]
    %v51 = vld [vmem:[#allocation3 + $0x8] sm:$0xff]
    %v52 = vld [vmem:[#allocation3 + $0x10] sm:$0xff]
    %v53 = vld [vmem:[#allocation3 + $0x18] sm:$0xff]
    %v54 = vld [vmem:[#allocation6] sm:$0xff]
    %v55 = vld [vmem:[#allocation6 + $0x8] sm:$0xff]
    %v56 = vld [vmem:[#allocation6 + $0x10] sm:$0xff]
    %v57 = vld [vmem:[#allocation6 + $0x18] sm:$0xff]
    %v58 = vld [vmem:[#allocation6 + $0x20] sm:$0xff]
    %v59 = vld [vmem:[#allocation6 + $0x28] sm:$0xff]
    %v60 = vld [vmem:[#allocation6 + $0x30] sm:$0xff]
    %v61 = vld [vmem:[#allocation6 + $0x38] sm:$0xff]
    %v62 = vld [vmem:[#allocation6 + $0x40] sm:$0xff]
    %v63 = vld [vmem:[#allocation6 + $0x48] sm:$0xff]
    %v64 = vld [vmem:[#allocation6 + $0x50] sm:$0xff]
    %v65 = vld [vmem:[#allocation6 + $0x58] sm:$0xff]
    %v66 = vld [vmem:[#allocation6 + $0x60] sm:$0xff]
    %v67 = vld [vmem:[#allocation6 + $0x68] sm:$0xff]
    %v68 = vld [vmem:[#allocation6 + $0x70] sm:$0xff]
    %v69 = vld [vmem:[#allocation6 + $0x78] sm:$0xff]
    %v70 = vld [vmem:[#allocation6 + $0x80] sm:$0xff]
    %v71 = vld [vmem:[#allocation6 + $0x88] sm:$0xff]
    %v72 = vld [vmem:[#allocation6 + $0x90] sm:$0xff]
    %v73 = vld [vmem:[#allocation6 + $0x98] sm:$0xff]
    %v74 = vld [vmem:[#allocation6 + $0xa0] sm:$0xff]
    %v75 = vld [vmem:[#allocation6 + $0xa8] sm:$0xff]
    %v76 = vld [vmem:[#allocation6 + $0xb0] sm:$0xff]
    %v77 = vld [vmem:[#allocation6 + $0xb8] sm:$0xff]
    %v78 = vld [vmem:[#allocation6 + $0xc0] sm:$0xff]
    %v79 = vld [vmem:[#allocation6 + $0xc8] sm:$0xff]
    %v80 = vld [vmem:[#allocation6 + $0xd0] sm:$0xff]
    %v81 = vld [vmem:[#allocation6 + $0xd8] sm:$0xff]
    %v82 = vld [vmem:[#allocation6 + $0xe0] sm:$0xff]
    %v83 = vld [vmem:[#allocation6 + $0xe8] sm:$0xff]
    %v84 = vld [vmem:[#allocation6 + $0xf0] sm:$0xff]
    %v85 = vld [vmem:[#allocation6 + $0xf8] sm:$0xff]
    %v86 = vld [vmem:[#allocation6 + $0x100] sm:$0xff]
    %v87 = vld [vmem:[#allocation6 + $0x108] sm:$0xff]
    %v88 = vld [vmem:[#allocation6 + $0x110] sm:$0xff]
    %v89 = vld [vmem:[#allocation6 + $0x118] sm:$0xff]
    %v90 = vld [vmem:[#allocation6 + $0x120] sm:$0xff]
    %v91 = vld [vmem:[#allocation6 + $0x128] sm:$0xff]
    %v92 = vld [vmem:[#allocation6 + $0x130] sm:$0xff]
    %v93 = vld [vmem:[#allocation6 + $0x138] sm:$0xff]
    %v94 = vld [vmem:[#allocation6 + $0x140] sm:$0xff]
    %v95 = vld [vmem:[#allocation6 + $0x148] sm:$0xff]
    %v96 = vld [vmem:[#allocation6 + $0x150] sm:$0xff]
    %v97 = vld [vmem:[#allocation6 + $0x158] sm:$0xff]
    %v98 = vld [vmem:[#allocation6 + $0x160] sm:$0xff]
    %v99 = vld [vmem:[#allocation6 + $0x168] sm:$0xff]
    %v100 = vld [vmem:[#allocation6 + $0x170] sm:$0xff]
    %v101 = vld [vmem:[#allocation6 + $0x178] sm:$0xff]
    %v102 = vld [vmem:[#allocation6 + $0x180] sm:$0xff]
    %v103 = vld [vmem:[#allocation6 + $0x188] sm:$0xff]
    %v104 = vld [vmem:[#allocation6 + $0x190] sm:$0xff]
    %v105 = vld [vmem:[#allocation6 + $0x198] sm:$0xff]
    %v106 = vld [vmem:[#allocation6 + $0x1a0] sm:$0xff]
    %v107 = vld [vmem:[#allocation6 + $0x1a8] sm:$0xff]
    %v108 = vld [vmem:[#allocation6 + $0x1b0] sm:$0xff]
    %v109 = vld [vmem:[#allocation6 + $0x1b8] sm:$0xff]
    %v110 = vld [vmem:[#allocation6 + $0x1c0] sm:$0xff]
    %v111 = vld [vmem:[#allocation6 + $0x1c8] sm:$0xff]
    %v112 = vld [vmem:[#allocation6 + $0x1d0] sm:$0xff]
    %v113 = vld [vmem:[#allocation6 + $0x1d8] sm:$0xff]
    %v114 = vld [vmem:[#allocation6 + $0x1e0] sm:$0xff]
    %v115 = vld [vmem:[#allocation6 + $0x1e8] sm:$0xff]
    %v116 = vld [vmem:[#allocation6 + $0x1f0] sm:$0xff]
    %v117 = vld [vmem:[#allocation6 + $0x1f8] sm:$0xff]
    %v118 = vld [vmem:[#allocation6 + $0x200] sm:$0xff]
    %v119 = vld [vmem:[#allocation6 + $0x208] sm:$0xff]
    %v120 = vld [vmem:[#allocation6 + $0x210] sm:$0xff]
    %v121 = vld [vmem:[#allocation6 + $0x218] sm:$0xff]
    %v122 = vld [vmem:[#allocation6 + $0x220] sm:$0xff]
    %v123 = vld [vmem:[#allocation6 + $0x228] sm:$0xff]
    %v124 = vld [vmem:[#allocation6 + $0x230] sm:$0xff]
    %v125 = vld [vmem:[#allocation6 + $0x238] sm:$0xff]
    %v126 = vld [vmem:[#allocation6 + $0x240] sm:$0xff]
    %v127 = vld [vmem:[#allocation6 + $0x248] sm:$0xff]
    %v128 = vld [vmem:[#allocation6 + $0x250] sm:$0xff]
    %v129 = vld [vmem:[#allocation6 + $0x258] sm:$0xff]
    %v130 = vld [vmem:[#allocation6 + $0x260] sm:$0xff]
    %v131 = vld [vmem:[#allocation6 + $0x268] sm:$0xff]
    %v132 = vld [vmem:[#allocation6 + $0x270] sm:$0xff]
    %v133 = vld [vmem:[#allocation6 + $0x278] sm:$0xff]
    %v134 = vld [vmem:[#allocation6 + $0x280] sm:$0xff]
    %v135 = vld [vmem:[#allocation6 + $0x288] sm:$0xff]
    %v136 = vld [vmem:[#allocation6 + $0x290] sm:$0xff]
    %v137 = vld [vmem:[#allocation6 + $0x298] sm:$0xff]
    %v138 = vld [vmem:[#allocation6 + $0x2a0] sm:$0xff]
    %v139 = vld [vmem:[#allocation6 + $0x2a8] sm:$0xff]
    %v140 = vld [vmem:[#allocation6 + $0x2b0] sm:$0xff]
    %v141 = vld [vmem:[#allocation6 + $0x2b8] sm:$0xff]
    %v142 = vld [vmem:[#allocation6 + $0x2c0] sm:$0xff]
    %v143 = vld [vmem:[#allocation6 + $0x2c8] sm:$0xff]
    %v144 = vld [vmem:[#allocation6 + $0x2d0] sm:$0xff]
    %v145 = vld [vmem:[#allocation6 + $0x2d8] sm:$0xff]
    %v146 = vld [vmem:[#allocation6 + $0x2e0] sm:$0xff]
    %v147 = vld [vmem:[#allocation6 + $0x2e8] sm:$0xff]
    %v148 = vld [vmem:[#allocation6 + $0x2f0] sm:$0xff]
    %v149 = vld [vmem:[#allocation6 + $0x2f8] sm:$0xff]
    %v150 = vld [vmem:[#allocation6 + $0x300] sm:$0xff]
    %v151 = vld [vmem:[#allocation6 + $0x308] sm:$0xff]
    %v152 = vld [vmem:[#allocation6 + $0x310] sm:$0xff]
    %v153 = vld [vmem:[#allocation6 + $0x318] sm:$0xff]
    %v154 = vld [vmem:[#allocation6 + $0x320] sm:$0xff]
    %v155 = vld [vmem:[#allocation6 + $0x328] sm:$0xff]
    %v156 = vld [vmem:[#allocation6 + $0x330] sm:$0xff]
    %v157 = vld [vmem:[#allocation6 + $0x338] sm:$0xff]
    %v158 = vld [vmem:[#allocation6 + $0x340] sm:$0xff]
    %v159 = vld [vmem:[#allocation6 + $0x348] sm:$0xff]
    %v160 = vld [vmem:[#allocation6 + $0x350] sm:$0xff]
    %v161 = vld [vmem:[#allocation6 + $0x358] sm:$0xff]
    %v162 = vld [vmem:[#allocation6 + $0x360] sm:$0xff]
    %v163 = vld [vmem:[#allocation6 + $0x368] sm:$0xff]
    %v164 = vld [vmem:[#allocation6 + $0x370] sm:$0xff]
    %v165 = vld [vmem:[#allocation6 + $0x378] sm:$0xff]
    %v166 = vld [vmem:[#allocation6 + $0x380] sm:$0xff]
    %v167 = vld [vmem:[#allocation6 + $0x388] sm:$0xff]
    %v168 = vld [vmem:[#allocation6 + $0x390] sm:$0xff]
    %v169 = vld [vmem:[#allocation6 + $0x398] sm:$0xff]
    %v170 = vld [vmem:[#allocation6 + $0x3a0] sm:$0xff]
    %v171 = vld [vmem:[#allocation6 + $0x3a8] sm:$0xff]
    %v172 = vld [vmem:[#allocation6 + $0x3b0] sm:$0xff]
    %v173 = vld [vmem:[#allocation6 + $0x3b8] sm:$0xff]
    %v174 = vld [vmem:[#allocation6 + $0x3c0] sm:$0xff]
    %v175 = vld [vmem:[#allocation6 + $0x3c8] sm:$0xff]
    %v176 = vld [vmem:[#allocation6 + $0x3d0] sm:$0xff]
    %v177 = vld [vmem:[#allocation6 + $0x3d8] sm:$0xff]
    %v178 = vld [vmem:[#allocation6 + $0x3e0] sm:$0xff]
    %v179 = vld [vmem:[#allocation6 + $0x3e8] sm:$0xff]
    %v180 = vld [vmem:[#allocation6 + $0x3f0] sm:$0xff]
    %v181 = vld [vmem:[#allocation6 + $0x3f8] sm:$0xff]
    %v186 = vunpack.c.l.b16 %v50
    %v187 = vunpack.c.h.b16 %v50
    %v188 = vunpack.c.l.b16 %v51
    %v189 = vunpack.c.h.b16 %v51
    %v190 = vunpack.c.l.b16 %v52
    %v191 = vunpack.c.h.b16 %v52
    %v192 = vunpack.c.l.b16 %v53
    %v193 = vunpack.c.h.b16 %v53
    %v194 = vpack.c.b16 %v186, %v186
    %v195 = vpack.c.b16 %v187, %v187
    %v196 = vpack.c.b16 %v188, %v188
    %v197 = vpack.c.b16 %v189, %v189
    %v198 = vpack.c.b16 %v190, %v190
    %v199 = vpack.c.b16 %v191, %v191
    %v200 = vpack.c.b16 %v192, %v192
    %v201 = vpack.c.b16 %v193, %v193
    %v338 = vunpack.c.l.b16 %v54
    %v339 = vunpack.c.h.b16 %v54
    %v340 = vunpack.c.l.b16 %v55
    %v341 = vunpack.c.h.b16 %v55
    %v342 = vunpack.c.l.b16 %v56
    %v343 = vunpack.c.h.b16 %v56
    %v344 = vunpack.c.l.b16 %v57
    %v345 = vunpack.c.h.b16 %v57
    %v346 = vunpack.c.l.b16 %v58
    %v347 = vunpack.c.h.b16 %v58
    %v348 = vunpack.c.l.b16 %v59
    %v349 = vunpack.c.h.b16 %v59
    %v350 = vunpack.c.l.b16 %v60
    %v351 = vunpack.c.h.b16 %v60
    %v352 = vunpack.c.l.b16 %v61
    %v353 = vunpack.c.h.b16 %v61
    %v354 = vunpack.c.l.b16 %v62
    %v355 = vunpack.c.h.b16 %v62
    %v356 = vunpack.c.l.b16 %v63
    %v357 = vunpack.c.h.b16 %v63
    %v358 = vunpack.c.l.b16 %v64
    %v359 = vunpack.c.h.b16 %v64
    %v360 = vunpack.c.l.b16 %v65
    %v361 = vunpack.c.h.b16 %v65
    %v362 = vunpack.c.l.b16 %v66
    %v363 = vunpack.c.h.b16 %v66
    %v364 = vunpack.c.l.b16 %v67
    %v365 = vunpack.c.h.b16 %v67
    %v366 = vunpack.c.l.b16 %v68
    %v367 = vunpack.c.h.b16 %v68
    %v368 = vunpack.c.l.b16 %v69
    %v369 = vunpack.c.h.b16 %v69
    %v370 = vunpack.c.l.b16 %v70
    %v371 = vunpack.c.h.b16 %v70
    %v372 = vunpack.c.l.b16 %v71
    %v373 = vunpack.c.h.b16 %v71
    %v374 = vunpack.c.l.b16 %v72
    %v375 = vunpack.c.h.b16 %v72
    %v376 = vunpack.c.l.b16 %v73
    %v377 = vunpack.c.h.b16 %v73
    %v378 = vunpack.c.l.b16 %v74
    %v379 = vunpack.c.h.b16 %v74
    %v380 = vunpack.c.l.b16 %v75
    %v381 = vunpack.c.h.b16 %v75
    %v382 = vunpack.c.l.b16 %v76
    %v383 = vunpack.c.h.b16 %v76
    %v384 = vunpack.c.l.b16 %v77
    %v385 = vunpack.c.h.b16 %v77
    %v386 = vunpack.c.l.b16 %v78
    %v387 = vunpack.c.h.b16 %v78
    %v388 = vunpack.c.l.b16 %v79
    %v389 = vunpack.c.h.b16 %v79
    %v390 = vunpack.c.l.b16 %v80
    %v391 = vunpack.c.h.b16 %v80
    %v392 = vunpack.c.l.b16 %v81
    %v393 = vunpack.c.h.b16 %v81
    %v394 = vunpack.c.l.b16 %v82
    %v395 = vunpack.c.h.b16 %v82
    %v396 = vunpack.c.l.b16 %v83
    %v397 = vunpack.c.h.b16 %v83
    %v398 = vunpack.c.l.b16 %v84
    %v399 = vunpack.c.h.b16 %v84
    %v400 = vunpack.c.l.b16 %v85
    %v401 = vunpack.c.h.b16 %v85
    %v402 = vunpack.c.l.b16 %v86
    %v403 = vunpack.c.h.b16 %v86
    %v404 = vunpack.c.l.b16 %v87
    %v405 = vunpack.c.h.b16 %v87
    %v406 = vunpack.c.l.b16 %v88
    %v407 = vunpack.c.h.b16 %v88
    %v408 = vunpack.c.l.b16 %v89
    %v409 = vunpack.c.h.b16 %v89
    %v410 = vunpack.c.l.b16 %v90
    %v411 = vunpack.c.h.b16 %v90
    %v412 = vunpack.c.l.b16 %v91
    %v413 = vunpack.c.h.b16 %v91
    %v414 = vunpack.c.l.b16 %v92
    %v415 = vunpack.c.h.b16 %v92
    %v416 = vunpack.c.l.b16 %v93
    %v417 = vunpack.c.h.b16 %v93
    %v418 = vunpack.c.l.b16 %v94
    %v419 = vunpack.c.h.b16 %v94
    %v420 = vunpack.c.l.b16 %v95
    %v421 = vunpack.c.h.b16 %v95
    %v422 = vunpack.c.l.b16 %v96
    %v423 = vunpack.c.h.b16 %v96
    %v424 = vunpack.c.l.b16 %v97
    %v425 = vunpack.c.h.b16 %v97
    %v426 = vunpack.c.l.b16 %v98
    %v427 = vunpack.c.h.b16 %v98
    %v428 = vunpack.c.l.b16 %v99
    %v429 = vunpack.c.h.b16 %v99
    %v430 = vunpack.c.l.b16 %v100
    %v431 = vunpack.c.h.b16 %v100
    %v432 = vunpack.c.l.b16 %v101
    %v433 = vunpack.c.h.b16 %v101
    %v434 = vunpack.c.l.b16 %v102
    %v435 = vunpack.c.h.b16 %v102
    %v436 = vunpack.c.l.b16 %v103
    %v437 = vunpack.c.h.b16 %v103
    %v438 = vunpack.c.l.b16 %v104
    %v439 = vunpack.c.h.b16 %v104
    %v440 = vunpack.c.l.b16 %v105
    %v441 = vunpack.c.h.b16 %v105
    %v442 = vunpack.c.l.b16 %v106
    %v443 = vunpack.c.h.b16 %v106
    %v444 = vunpack.c.l.b16 %v107
    %v445 = vunpack.c.h.b16 %v107
    %v446 = vunpack.c.l.b16 %v108
    %v447 = vunpack.c.h.b16 %v108
    %v448 = vunpack.c.l.b16 %v109
    %v449 = vunpack.c.h.b16 %v109
    %v450 = vunpack.c.l.b16 %v110
    %v451 = vunpack.c.h.b16 %v110
    %v452 = vunpack.c.l.b16 %v111
    %v453 = vunpack.c.h.b16 %v111
    %v454 = vunpack.c.l.b16 %v112
    %v455 = vunpack.c.h.b16 %v112
    %v456 = vunpack.c.l.b16 %v113
    %v457 = vunpack.c.h.b16 %v113
    %v458 = vunpack.c.l.b16 %v114
    %v459 = vunpack.c.h.b16 %v114
    %v460 = vunpack.c.l.b16 %v115
    %v461 = vunpack.c.h.b16 %v115
    %v462 = vunpack.c.l.b16 %v116
    %v463 = vunpack.c.h.b16 %v116
    %v464 = vunpack.c.l.b16 %v117
    %v465 = vunpack.c.h.b16 %v117
    %v466 = vunpack.c.l.b16 %v118
    %v467 = vunpack.c.h.b16 %v118
    %v468 = vunpack.c.l.b16 %v119
    %v469 = vunpack.c.h.b16 %v119
    %v470 = vunpack.c.l.b16 %v120
    %v471 = vunpack.c.h.b16 %v120
    %v472 = vunpack.c.l.b16 %v121
    %v473 = vunpack.c.h.b16 %v121
    %v474 = vunpack.c.l.b16 %v122
    %v475 = vunpack.c.h.b16 %v122
    %v476 = vunpack.c.l.b16 %v123
    %v477 = vunpack.c.h.b16 %v123
    %v478 = vunpack.c.l.b16 %v124
    %v479 = vunpack.c.h.b16 %v124
    %v480 = vunpack.c.l.b16 %v125
    %v481 = vunpack.c.h.b16 %v125
    %v482 = vunpack.c.l.b16 %v126
    %v483 = vunpack.c.h.b16 %v126
    %v484 = vunpack.c.l.b16 %v127
    %v485 = vunpack.c.h.b16 %v127
    %v486 = vunpack.c.l.b16 %v128
    %v487 = vunpack.c.h.b16 %v128
    %v488 = vunpack.c.l.b16 %v129
    %v489 = vunpack.c.h.b16 %v129
    %v490 = vunpack.c.l.b16 %v130
    %v491 = vunpack.c.h.b16 %v130
    %v492 = vunpack.c.l.b16 %v131
    %v493 = vunpack.c.h.b16 %v131
    %v494 = vunpack.c.l.b16 %v132
    %v495 = vunpack.c.h.b16 %v132
    %v496 = vunpack.c.l.b16 %v133
    %v497 = vunpack.c.h.b16 %v133
    %v498 = vunpack.c.l.b16 %v134
    %v499 = vunpack.c.h.b16 %v134
    %v500 = vunpack.c.l.b16 %v135
    %v501 = vunpack.c.h.b16 %v135
    %v502 = vunpack.c.l.b16 %v136
    %v503 = vunpack.c.h.b16 %v136
    %v504 = vunpack.c.l.b16 %v137
    %v505 = vunpack.c.h.b16 %v137
    %v506 = vunpack.c.l.b16 %v138
    %v507 = vunpack.c.h.b16 %v138
    %v508 = vunpack.c.l.b16 %v139
    %v509 = vunpack.c.h.b16 %v139
    %v510 = vunpack.c.l.b16 %v140
    %v511 = vunpack.c.h.b16 %v140
    %v512 = vunpack.c.l.b16 %v141
    %v513 = vunpack.c.h.b16 %v141
    %v514 = vunpack.c.l.b16 %v142
    %v515 = vunpack.c.h.b16 %v142
    %v516 = vunpack.c.l.b16 %v143
    %v517 = vunpack.c.h.b16 %v143
    %v518 = vunpack.c.l.b16 %v144
    %v519 = vunpack.c.h.b16 %v144
    %v520 = vunpack.c.l.b16 %v145
    %v521 = vunpack.c.h.b16 %v145
    %v522 = vunpack.c.l.b16 %v146
    %v523 = vunpack.c.h.b16 %v146
    %v524 = vunpack.c.l.b16 %v147
    %v525 = vunpack.c.h.b16 %v147
    %v526 = vunpack.c.l.b16 %v148
    %v527 = vunpack.c.h.b16 %v148
    %v528 = vunpack.c.l.b16 %v149
    %v529 = vunpack.c.h.b16 %v149
    %v530 = vunpack.c.l.b16 %v150
    %v531 = vunpack.c.h.b16 %v150
    %v532 = vunpack.c.l.b16 %v151
    %v533 = vunpack.c.h.b16 %v151
    %v534 = vunpack.c.l.b16 %v152
    %v535 = vunpack.c.h.b16 %v152
    %v536 = vunpack.c.l.b16 %v153
    %v537 = vunpack.c.h.b16 %v153
    %v538 = vunpack.c.l.b16 %v154
    %v539 = vunpack.c.h.b16 %v154
    %v540 = vunpack.c.l.b16 %v155
    %v541 = vunpack.c.h.b16 %v155
    %v542 = vunpack.c.l.b16 %v156
    %v543 = vunpack.c.h.b16 %v156
    %v544 = vunpack.c.l.b16 %v157
    %v545 = vunpack.c.h.b16 %v157
    %v546 = vunpack.c.l.b16 %v158
    %v547 = vunpack.c.h.b16 %v158
    %v548 = vunpack.c.l.b16 %v159
    %v549 = vunpack.c.h.b16 %v159
    %v550 = vunpack.c.l.b16 %v160
    %v551 = vunpack.c.h.b16 %v160
    %v552 = vunpack.c.l.b16 %v161
    %v553 = vunpack.c.h.b16 %v161
    %v554 = vunpack.c.l.b16 %v162
    %v555 = vunpack.c.h.b16 %v162
    %v556 = vunpack.c.l.b16 %v163
    %v557 = vunpack.c.h.b16 %v163
    %v558 = vunpack.c.l.b16 %v164
    %v559 = vunpack.c.h.b16 %v164
    %v560 = vunpack.c.l.b16 %v165
    %v561 = vunpack.c.h.b16 %v165
    %v562 = vunpack.c.l.b16 %v166
    %v563 = vunpack.c.h.b16 %v166
    %v564 = vunpack.c.l.b16 %v167
    %v565 = vunpack.c.h.b16 %v167
    %v566 = vunpack.c.l.b16 %v168
    %v567 = vunpack.c.h.b16 %v168
    %v568 = vunpack.c.l.b16 %v169
    %v569 = vunpack.c.h.b16 %v169
    %v570 = vunpack.c.l.b16 %v170
    %v571 = vunpack.c.h.b16 %v170
    %v572 = vunpack.c.l.b16 %v171
    %v573 = vunpack.c.h.b16 %v171
    %v574 = vunpack.c.l.b16 %v172
    %v575 = vunpack.c.h.b16 %v172
    %v576 = vunpack.c.l.b16 %v173
    %v577 = vunpack.c.h.b16 %v173
    %v578 = vunpack.c.l.b16 %v174
    %v579 = vunpack.c.h.b16 %v174
    %v580 = vunpack.c.l.b16 %v175
    %v581 = vunpack.c.h.b16 %v175
    %v582 = vunpack.c.l.b16 %v176
    %v583 = vunpack.c.h.b16 %v176
    %v584 = vunpack.c.l.b16 %v177
    %v585 = vunpack.c.h.b16 %v177
    %v586 = vunpack.c.l.b16 %v178
    %v587 = vunpack.c.h.b16 %v178
    %v588 = vunpack.c.l.b16 %v179
    %v589 = vunpack.c.h.b16 %v179
    %v590 = vunpack.c.l.b16 %v180
    %v591 = vunpack.c.h.b16 %v180
    %v592 = vunpack.c.l.b16 %v181
    %v593 = vunpack.c.h.b16 %v181
    %v594 = vpack.c.b16 %v340, %v338
    %v595 = vpack.c.b16 %v341, %v339
    %v596 = vpack.c.b16 %v344, %v342
    %v597 = vpack.c.b16 %v345, %v343
    %v598 = vpack.c.b16 %v348, %v346
    %v599 = vpack.c.b16 %v349, %v347
    %v600 = vpack.c.b16 %v352, %v350
    %v601 = vpack.c.b16 %v353, %v351
    %v602 = vpack.c.b16 %v356, %v354
    %v603 = vpack.c.b16 %v357, %v355
    %v604 = vpack.c.b16 %v360, %v358
    %v605 = vpack.c.b16 %v361, %v359
    %v606 = vpack.c.b16 %v364, %v362
    %v607 = vpack.c.b16 %v365, %v363
    %v608 = vpack.c.b16 %v368, %v366
    %v609 = vpack.c.b16 %v369, %v367
    %v610 = vpack.c.b16 %v372, %v370
    %v611 = vpack.c.b16 %v373, %v371
    %v612 = vpack.c.b16 %v376, %v374
    %v613 = vpack.c.b16 %v377, %v375
    %v614 = vpack.c.b16 %v380, %v378
    %v615 = vpack.c.b16 %v381, %v379
    %v616 = vpack.c.b16 %v384, %v382
    %v617 = vpack.c.b16 %v385, %v383
    %v618 = vpack.c.b16 %v388, %v386
    %v619 = vpack.c.b16 %v389, %v387
    %v620 = vpack.c.b16 %v392, %v390
    %v621 = vpack.c.b16 %v393, %v391
    %v622 = vpack.c.b16 %v396, %v394
    %v623 = vpack.c.b16 %v397, %v395
    %v624 = vpack.c.b16 %v400, %v398
    %v625 = vpack.c.b16 %v401, %v399
    %v626 = vpack.c.b16 %v404, %v402
    %v627 = vpack.c.b16 %v405, %v403
    %v628 = vpack.c.b16 %v408, %v406
    %v629 = vpack.c.b16 %v409, %v407
    %v630 = vpack.c.b16 %v412, %v410
    %v631 = vpack.c.b16 %v413, %v411
    %v632 = vpack.c.b16 %v416, %v414
    %v633 = vpack.c.b16 %v417, %v415
    %v634 = vpack.c.b16 %v420, %v418
    %v635 = vpack.c.b16 %v421, %v419
    %v636 = vpack.c.b16 %v424, %v422
    %v637 = vpack.c.b16 %v425, %v423
    %v638 = vpack.c.b16 %v428, %v426
    %v639 = vpack.c.b16 %v429, %v427
    %v640 = vpack.c.b16 %v432, %v430
    %v641 = vpack.c.b16 %v433, %v431
    %v642 = vpack.c.b16 %v436, %v434
    %v643 = vpack.c.b16 %v437, %v435
    %v644 = vpack.c.b16 %v440, %v438
    %v645 = vpack.c.b16 %v441, %v439
    %v646 = vpack.c.b16 %v444, %v442
    %v647 = vpack.c.b16 %v445, %v443
    %v648 = vpack.c.b16 %v448, %v446
    %v649 = vpack.c.b16 %v449, %v447
    %v650 = vpack.c.b16 %v452, %v450
    %v651 = vpack.c.b16 %v453, %v451
    %v652 = vpack.c.b16 %v456, %v454
    %v653 = vpack.c.b16 %v457, %v455
    %v654 = vpack.c.b16 %v460, %v458
    %v655 = vpack.c.b16 %v461, %v459
    %v656 = vpack.c.b16 %v464, %v462
    %v657 = vpack.c.b16 %v465, %v463
    %v658 = vpack.c.b16 %v468, %v466
    %v659 = vpack.c.b16 %v469, %v467
    %v660 = vpack.c.b16 %v472, %v470
    %v661 = vpack.c.b16 %v473, %v471
    %v662 = vpack.c.b16 %v476, %v474
    %v663 = vpack.c.b16 %v477, %v475
    %v664 = vpack.c.b16 %v480, %v478
    %v665 = vpack.c.b16 %v481, %v479
    %v666 = vpack.c.b16 %v484, %v482
    %v667 = vpack.c.b16 %v485, %v483
    %v668 = vpack.c.b16 %v488, %v486
    %v669 = vpack.c.b16 %v489, %v487
    %v670 = vpack.c.b16 %v492, %v490
    %v671 = vpack.c.b16 %v493, %v491
    %v672 = vpack.c.b16 %v496, %v494
    %v673 = vpack.c.b16 %v497, %v495
    %v674 = vpack.c.b16 %v500, %v498
    %v675 = vpack.c.b16 %v501, %v499
    %v676 = vpack.c.b16 %v504, %v502
    %v677 = vpack.c.b16 %v505, %v503
    %v678 = vpack.c.b16 %v508, %v506
    %v679 = vpack.c.b16 %v509, %v507
    %v680 = vpack.c.b16 %v512, %v510
    %v681 = vpack.c.b16 %v513, %v511
    %v682 = vpack.c.b16 %v516, %v514
    %v683 = vpack.c.b16 %v517, %v515
    %v684 = vpack.c.b16 %v520, %v518
    %v685 = vpack.c.b16 %v521, %v519
    %v686 = vpack.c.b16 %v524, %v522
    %v687 = vpack.c.b16 %v525, %v523
    %v688 = vpack.c.b16 %v528, %v526
    %v689 = vpack.c.b16 %v529, %v527
    %v690 = vpack.c.b16 %v532, %v530
    %v691 = vpack.c.b16 %v533, %v531
    %v692 = vpack.c.b16 %v536, %v534
    %v693 = vpack.c.b16 %v537, %v535
    %v694 = vpack.c.b16 %v540, %v538
    %v695 = vpack.c.b16 %v541, %v539
    %v696 = vpack.c.b16 %v544, %v542
    %v697 = vpack.c.b16 %v545, %v543
    %v698 = vpack.c.b16 %v548, %v546
    %v699 = vpack.c.b16 %v549, %v547
    %v700 = vpack.c.b16 %v552, %v550
    %v701 = vpack.c.b16 %v553, %v551
    %v702 = vpack.c.b16 %v556, %v554
    %v703 = vpack.c.b16 %v557, %v555
    %v704 = vpack.c.b16 %v560, %v558
    %v705 = vpack.c.b16 %v561, %v559
    %v706 = vpack.c.b16 %v564, %v562
    %v707 = vpack.c.b16 %v565, %v563
    %v708 = vpack.c.b16 %v568, %v566
    %v709 = vpack.c.b16 %v569, %v567
    %v710 = vpack.c.b16 %v572, %v570
    %v711 = vpack.c.b16 %v573, %v571
    %v712 = vpack.c.b16 %v576, %v574
    %v713 = vpack.c.b16 %v577, %v575
    %v714 = vpack.c.b16 %v580, %v578
    %v715 = vpack.c.b16 %v581, %v579
    %v716 = vpack.c.b16 %v584, %v582
    %v717 = vpack.c.b16 %v585, %v583
    %v718 = vpack.c.b16 %v588, %v586
    %v719 = vpack.c.b16 %v589, %v587
    %v720 = vpack.c.b16 %v592, %v590
    %v721 = vpack.c.b16 %v593, %v591
    %850 = vmatpush.bf16.msra.mxu0 %v608
    %851 = vmatpush.bf16.msra.mxu0 %v606
    %852 = vmatpush.bf16.msra.mxu0 %v604
    %853 = vmatpush.bf16.msra.mxu0 %v602
    %854 = vmatpush.bf16.msra.mxu0 %v600
    %855 = vmatpush.bf16.msra.mxu0 %v598
    %856 = vmatpush.bf16.msra.mxu0 %v596
    %857 = vmatpush.bf16.msra.mxu0 %v594
    %858 = vmatmul.bf16.gmra.mxu0 %v194
    %v859 = vpop.f32.mrf.mxu0
    %v860 = vadd.f32 0.0, %v859
    %v861 = vpop.f32.mrf.mxu0
    %862 = vdwg.mxu0
    %863 = vmatpush.bf16.msra.mxu0 %v624
    %864 = vmatpush.bf16.msra.mxu0 %v622
    %865 = vmatpush.bf16.msra.mxu0 %v620
    %866 = vmatpush.bf16.msra.mxu0 %v618
    %867 = vmatpush.bf16.msra.mxu0 %v616
    %868 = vmatpush.bf16.msra.mxu0 %v614
    %869 = vmatpush.bf16.msra.mxu0 %v612
    %870 = vmatpush.bf16.msra.mxu0 %v610
    %871 = vmatmul.bf16.gmra.mxu0 %v195
    %v872 = vpop.f32.mrf.mxu0
    %v873 = vadd.f32 %v860, %v872
    %v874 = vpop.f32.mrf.mxu0
    %875 = vdwg.mxu0
    %876 = vmatpush.bf16.msra.mxu0 %v640
    %877 = vmatpush.bf16.msra.mxu0 %v638
    %878 = vmatpush.bf16.msra.mxu0 %v636
    %879 = vmatpush.bf16.msra.mxu0 %v634
    %880 = vmatpush.bf16.msra.mxu0 %v632
    %881 = vmatpush.bf16.msra.mxu0 %v630
    %882 = vmatpush.bf16.msra.mxu0 %v628
    %883 = vmatpush.bf16.msra.mxu0 %v626
    %884 = vmatmul.bf16.gmra.mxu0 %v196
    %v885 = vpop.f32.mrf.mxu0
    %v886 = vadd.f32 %v873, %v885
    %v887 = vpop.f32.mrf.mxu0
    %888 = vdwg.mxu0
    %889 = vmatpush.bf16.msra.mxu0 %v656
    %890 = vmatpush.bf16.msra.mxu0 %v654
    %891 = vmatpush.bf16.msra.mxu0 %v652
    %892 = vmatpush.bf16.msra.mxu0 %v650
    %893 = vmatpush.bf16.msra.mxu0 %v648
    %894 = vmatpush.bf16.msra.mxu0 %v646
    %895 = vmatpush.bf16.msra.mxu0 %v644
    %896 = vmatpush.bf16.msra.mxu0 %v642
    %897 = vmatmul.bf16.gmra.mxu0 %v197
    %v898 = vpop.f32.mrf.mxu0
    %v899 = vadd.f32 %v886, %v898
    %v900 = vpop.f32.mrf.mxu0
    %901 = vdwg.mxu0
    %902 = vmatpush.bf16.msra.mxu0 %v672
    %903 = vmatpush.bf16.msra.mxu0 %v670
    %904 = vmatpush.bf16.msra.mxu0 %v668
    %905 = vmatpush.bf16.msra.mxu0 %v666
    %906 = vmatpush.bf16.msra.mxu0 %v664
    %907 = vmatpush.bf16.msra.mxu0 %v662
    %908 = vmatpush.bf16.msra.mxu0 %v660
    %909 = vmatpush.bf16.msra.mxu0 %v658
    %910 = vmatmul.bf16.gmra.mxu0 %v198
    %v911 = vpop.f32.mrf.mxu0
    %v912 = vadd.f32 %v899, %v911
    %v913 = vpop.f32.mrf.mxu0
    %914 = vdwg.mxu0
    %915 = vmatpush.bf16.msra.mxu0 %v688
    %916 = vmatpush.bf16.msra.mxu0 %v686
    %917 = vmatpush.bf16.msra.mxu0 %v684
    %918 = vmatpush.bf16.msra.mxu0 %v682
    %919 = vmatpush.bf16.msra.mxu0 %v680
    %920 = vmatpush.bf16.msra.mxu0 %v678
    %921 = vmatpush.bf16.msra.mxu0 %v676
    %922 = vmatpush.bf16.msra.mxu0 %v674
    %923 = vmatmul.bf16.gmra.mxu0 %v199
    %v924 = vpop.f32.mrf.mxu0
    %v925 = vadd.f32 %v912, %v924
    %v926 = vpop.f32.mrf.mxu0
    %927 = vdwg.mxu0
    %928 = vmatpush.bf16.msra.mxu0 %v704
    %929 = vmatpush.bf16.msra.mxu0 %v702
    %930 = vmatpush.bf16.msra.mxu0 %v700
    %931 = vmatpush.bf16.msra.mxu0 %v698
    %932 = vmatpush.bf16.msra.mxu0 %v696
    %933 = vmatpush.bf16.msra.mxu0 %v694
    %934 = vmatpush.bf16.msra.mxu0 %v692
    %935 = vmatpush.bf16.msra.mxu0 %v690
    %936 = vmatmul.bf16.gmra.mxu0 %v200
    %v937 = vpop.f32.mrf.mxu0
    %v938 = vadd.f32 %v925, %v937
    %v939 = vpop.f32.mrf.mxu0
    %940 = vdwg.mxu0
    %941 = vmatpush.bf16.msra.mxu0 %v720
    %942 = vmatpush.bf16.msra.mxu0 %v718
    %943 = vmatpush.bf16.msra.mxu0 %v716
    %944 = vmatpush.bf16.msra.mxu0 %v714
    %945 = vmatpush.bf16.msra.mxu0 %v712
    %946 = vmatpush.bf16.msra.mxu0 %v710
    %947 = vmatpush.bf16.msra.mxu0 %v708
    %948 = vmatpush.bf16.msra.mxu0 %v706
    %949 = vmatmul.bf16.gmra.mxu0 %v201
    %v950 = vpop.f32.mrf.mxu0
    %v951 = vadd.f32 %v938, %v950
    %v952 = vpop.f32.mrf.mxu0
    %953 = vdwg.mxu0
    %954 = vmatpush.bf16.msra.mxu0 %v609
    %955 = vmatpush.bf16.msra.mxu0 %v607
    %956 = vmatpush.bf16.msra.mxu0 %v605
    %957 = vmatpush.bf16.msra.mxu0 %v603
    %958 = vmatpush.bf16.msra.mxu0 %v601
    %959 = vmatpush.bf16.msra.mxu0 %v599
    %960 = vmatpush.bf16.msra.mxu0 %v597
    %961 = vmatpush.bf16.msra.mxu0 %v595
    %962 = vmatmul.bf16.gmra.mxu0 %v194
    %v963 = vpop.f32.mrf.mxu0
    %v964 = vadd.f32 0.0, %v963
    %v965 = vpop.f32.mrf.mxu0
    %966 = vdwg.mxu0
    %967 = vmatpush.bf16.msra.mxu0 %v625
    %968 = vmatpush.bf16.msra.mxu0 %v623
    %969 = vmatpush.bf16.msra.mxu0 %v621
    %970 = vmatpush.bf16.msra.mxu0 %v619
    %971 = vmatpush.bf16.msra.mxu0 %v617
    %972 = vmatpush.bf16.msra.mxu0 %v615
    %973 = vmatpush.bf16.msra.mxu0 %v613
    %974 = vmatpush.bf16.msra.mxu0 %v611
    %975 = vmatmul.bf16.gmra.mxu0 %v195
    %v976 = vpop.f32.mrf.mxu0
    %v977 = vadd.f32 %v964, %v976
    %v978 = vpop.f32.mrf.mxu0
    %979 = vdwg.mxu0
    %980 = vmatpush.bf16.msra.mxu0 %v641
    %981 = vmatpush.bf16.msra.mxu0 %v639
    %982 = vmatpush.bf16.msra.mxu0 %v637
    %983 = vmatpush.bf16.msra.mxu0 %v635
    %984 = vmatpush.bf16.msra.mxu0 %v633
    %985 = vmatpush.bf16.msra.mxu0 %v631
    %986 = vmatpush.bf16.msra.mxu0 %v629
    %987 = vmatpush.bf16.msra.mxu0 %v627
    %988 = vmatmul.bf16.gmra.mxu0 %v196
    %v989 = vpop.f32.mrf.mxu0
    %v990 = vadd.f32 %v977, %v989
    %v991 = vpop.f32.mrf.mxu0
    %992 = vdwg.mxu0
    %993 = vmatpush.bf16.msra.mxu0 %v657
    %994 = vmatpush.bf16.msra.mxu0 %v655
    %995 = vmatpush.bf16.msra.mxu0 %v653
    %996 = vmatpush.bf16.msra.mxu0 %v651
    %997 = vmatpush.bf16.msra.mxu0 %v649
    %998 = vmatpush.bf16.msra.mxu0 %v647
    %999 = vmatpush.bf16.msra.mxu0 %v645
    %1000 = vmatpush.bf16.msra.mxu0 %v643
    %1001 = vmatmul.bf16.gmra.mxu0 %v197
    %v1002 = vpop.f32.mrf.mxu0
    %v1003 = vadd.f32 %v990, %v1002
    %v1004 = vpop.f32.mrf.mxu0
    %1005 = vdwg.mxu0
    %1006 = vmatpush.bf16.msra.mxu0 %v673
    %1007 = vmatpush.bf16.msra.mxu0 %v671
    %1008 = vmatpush.bf16.msra.mxu0 %v669
    %1009 = vmatpush.bf16.msra.mxu0 %v667
    %1010 = vmatpush.bf16.msra.mxu0 %v665
    %1011 = vmatpush.bf16.msra.mxu0 %v663
    %1012 = vmatpush.bf16.msra.mxu0 %v661
    %1013 = vmatpush.bf16.msra.mxu0 %v659
    %1014 = vmatmul.bf16.gmra.mxu0 %v198
    %v1015 = vpop.f32.mrf.mxu0
    %v1016 = vadd.f32 %v1003, %v1015
    %v1017 = vpop.f32.mrf.mxu0
    %1018 = vdwg.mxu0
    %1019 = vmatpush.bf16.msra.mxu0 %v689
    %1020 = vmatpush.bf16.msra.mxu0 %v687
    %1021 = vmatpush.bf16.msra.mxu0 %v685
    %1022 = vmatpush.bf16.msra.mxu0 %v683
    %1023 = vmatpush.bf16.msra.mxu0 %v681
    %1024 = vmatpush.bf16.msra.mxu0 %v679
    %1025 = vmatpush.bf16.msra.mxu0 %v677
    %1026 = vmatpush.bf16.msra.mxu0 %v675
    %1027 = vmatmul.bf16.gmra.mxu0 %v199
    %v1028 = vpop.f32.mrf.mxu0
    %v1029 = vadd.f32 %v1016, %v1028
    %v1030 = vpop.f32.mrf.mxu0
    %1031 = vdwg.mxu0
    %1032 = vmatpush.bf16.msra.mxu0 %v705
    %1033 = vmatpush.bf16.msra.mxu0 %v703
    %1034 = vmatpush.bf16.msra.mxu0 %v701
    %1035 = vmatpush.bf16.msra.mxu0 %v699
    %1036 = vmatpush.bf16.msra.mxu0 %v697
    %1037 = vmatpush.bf16.msra.mxu0 %v695
    %1038 = vmatpush.bf16.msra.mxu0 %v693
    %1039 = vmatpush.bf16.msra.mxu0 %v691
    %1040 = vmatmul.bf16.gmra.mxu0 %v200
    %v1041 = vpop.f32.mrf.mxu0
    %v1042 = vadd.f32 %v1029, %v1041
    %v1043 = vpop.f32.mrf.mxu0
    %1044 = vdwg.mxu0
    %1045 = vmatpush.bf16.msra.mxu0 %v721
    %1046 = vmatpush.bf16.msra.mxu0 %v719
    %1047 = vmatpush.bf16.msra.mxu0 %v717
    %1048 = vmatpush.bf16.msra.mxu0 %v715
    %1049 = vmatpush.bf16.msra.mxu0 %v713
    %1050 = vmatpush.bf16.msra.mxu0 %v711
    %1051 = vmatpush.bf16.msra.mxu0 %v709
    %1052 = vmatpush.bf16.msra.mxu0 %v707
    %1053 = vmatmul.bf16.gmra.mxu0 %v201
    %v1054 = vpop.f32.mrf.mxu0
    %v1055 = vadd.f32 %v1042, %v1054
    %v1056 = vpop.f32.mrf.mxu0
    %1057 = vdwg.mxu0
    %v1058 = vadd.f32 %v48, %v951
    %v1059 = vadd.f32 %v49, %v1055
    %1060 = vst [vmem:[#allocation2] sm:$0xff] %v1058
    %1061 = vst [vmem:[#allocation2 + $0x8] sm:$0xff] %v1059
    // Predicated region
    $region22: #{tpu_custom_call.1} parent=1 // pred_check
      %p1062 = pneg %p42
    $region23: #{tpu_custom_call.1} parent=1 // pred_check_branch
      %1064 = sbr.rel (%p1062) target = $region25
    $region24: #{tpu_custom_call.1} parent=1 // pred_region
      %v1065 = vld [vmem:[#allocation2] sm:$0xff]
      %v1066 = vld [vmem:[#allocation2 + $0x8] sm:$0xff]
      %v1067 = vmul.f32 %v1065, %v1065
      %v1068 = vmul.f32 %v1066, %v1066
      %v1069 = vadd.f32 %v1067, %v1068
      %1070 = vadd.xlane.f32.xlu0 %v1069
      %v1071 = vpop.xlane.xlu0 %1070
      %v1072 = vrsqrt.pop %v1071
      %v1073 = vmul.f32 %v1072, %v1071
      %v1074 = vmul.f32 %v1073, %v1072
      %v1075 = vmul.f32 0.5, %v1074
      %v1076 = vsub.f32 1.5, %v1075
      %v1077 = vmul.f32 %v1072, %v1076
      %vm1078 = vweird.f32 %v1071
      %vm1079 = vweird.f32 %v1072
      %vm1080 = vmor %vm1078, %vm1079
      %v1081 = vsel %vm1080, %v1072, %v1077
      %v1082 = vmul.f32 %v1065, %v1081
      %v1083 = vmul.f32 %v1066, %v1081
      %1084 = vst [vmem:[#allocation8] sm:$0xff] %v1082
      %1085 = vst [vmem:[#allocation8 + $0x8] sm:$0xff] %v1083
    $region25: #{tpu_custom_call.1} parent=1 // pred_fallthru
      _
    // Predicated region
    $region26: #{tpu_custom_call.1} parent=1 // pred_check
      _
    $region27: #{tpu_custom_call.1} parent=1 // pred_check_branch
      %1087 = sbr.rel (0) target = $region29
    $region28: #{tpu_custom_call.1} parent=1 // pred_region
      %1089 = vsyncadd [#allocation5], 0
      %s1091 = sshll.u32 [#allocation8], 4
      %s1092 = int_to_ptr.vmem [resolvable:$true] %s1091
      %s1093 = sshll.u32 %s2, 4
      %s1094 = int_to_ptr.hbm [resolvable:$true] %s1093
      %1096 = dma.vmem_to_hbm [thread:$0]  %s1092, 256, %s1094, [#allocation5]
    $region29: #{tpu_custom_call.1} parent=1 // pred_fallthru
      _
    // Predicated region
    $region30: #{tpu_custom_call.1} parent=1 // pred_check
      _
    $region31: #{tpu_custom_call.1} parent=1 // pred_check_branch
      %1098 = sbr.rel (0) target = $region33
    $region32: #{tpu_custom_call.1} parent=1 // pred_region
      %1100 = dma.done [#allocation5], 256
    $region33: #{tpu_custom_call.1} parent=1 // pred_fallthru
      _
    %1101 = vsyncpa [#allocation4], 1
    %1102 = vsyncpa [#allocation7], 1
    %1103 = vsyncpa [#allocation5], 1

</llo_original>
